<compile_context>
chip_gen: v7x
topology: tpu7x:2x2x1
jax: 0.10.0
libtpu: 0.0.40
codegen_flags: <defaults>
</compile_context>

<pallas_src>
import functools

import jax
import jax.numpy as jnp
from jax.experimental import pallas as pl
from jax.experimental.pallas import tpu as pltpu

MULTICLASS_MODE = "multiclass"
BINARY_MODE = "binary"
MULTILABEL_MODE = "multilabel"

# Per-input f32 block budget (elements derived below).  2 inputs x 2 pipeline
# buffers x block plus f32 temporaries stays comfortably under the scoped VMEM
# limit on every chip generation (v5e/v6e: 128 MiB physical, v7x: 64 MiB).
_DEFAULT_BLOCK_BUDGET_BYTES = 2 << 20


def _mse_loss_kernel(yp_ref, yt_ref, out_ref, *, bn: int, C: int,
                     multiclass: bool):
    """One grid cell: (bn*C, t_hw) slab -> per-channel partial sum (1,1,1,C)."""
    t = yp_ref.shape[-1]
    ypf = yp_ref[...].astype(jnp.float32)          # (bn*C, t)
    ytf = yt_ref[...].astype(jnp.float32)          # (bn*C, t)

    if multiclass:
        # Recover the (sample, channel, pixel) grouping; softmax over channels
        # == log_softmax(dim=1).exp().  The reshape is an in-VMEM relayout,
        # hidden under the HBM DMA of the next block.
        yp3 = ypf.reshape(bn, C, t)
        m = jnp.max(yp3, axis=1, keepdims=True)
        e = jnp.exp(yp3 - m)
        denom = jnp.sum(e, axis=1, keepdims=True)
        # exact reciprocal keeps the 1e-5 test tolerance; approx=True would
        # add ~2^-12 relative error for a negligible perf gain here.
        p3 = e * pl.reciprocal(denom, approx=False)
        d3 = p3 - ytf.reshape(bn, C, t)
    else:
        # sigmoid == F.logsigmoid(x).exp(); elementwise, done in the flat
        # lane-dense layout, only the squared diff is regrouped per channel.
        d3 = (jax.nn.sigmoid(ypf) - ytf).reshape(bn, C, t)

    # Partial sum over the batch slab + spatial lanes of this tile.  Each grid
    # cell owns its own output block, so there is no cross-step accumulation
    # and both grid axes can run "parallel" (megacore split on v7x).
    out_ref[...] = jnp.sum(d3 * d3, axis=(0, 2))[None, None, None, :]


def _choose_tiles(N, C, HW, budget_bytes):
    """Pick (batch_tile, lane_tile) so each input block stays within budget."""
    budget_elems = max(budget_bytes // 4, 1024)   # budget in f32 elements

    if HW % 128 == 0:
        # Largest lane tile that divides HW, is a multiple of 128 and fits
        # (with a single sample's channel rows).
        t_hw = HW
        while C * t_hw > budget_elems and t_hw % 256 == 0:
            t_hw //= 2
    else:
        # Odd spatial sizes: take the whole lane axis (full-dim blocks are
        # always legal); such shapes are small in practice.
        # TODO(synk): pad HW to a multiple of 128 for very large odd shapes.
        t_hw = HW

    # Smallest batch tile whose row count (bn*C) is sublane-aligned (the
    # BlockSpec second-minor dim must be a multiple of 8 or the full extent).
    bn = None
    for cand in range(1, N + 1):
        if N % cand == 0 and (cand * C) % 8 == 0:
            bn = cand
            break
    if bn is None:
        bn = N      # full-extent rows are always a legal block

    # Grow the batch tile while the block stays within budget and the batch
    # tiling stays even (amortizes the ~0.35us per-grid-step overhead for
    # small images).
    grew = True
    while grew:
        grew = False
        for f in (2, 3, 5, 7):
            if (N // bn) % f == 0 and f * bn * C * t_hw <= budget_elems:
                bn *= f
                grew = True
                break
    return bn, t_hw


def mse_loss(y_pred, y_true, mode: str = MULTICLASS_MODE,
             from_logits: bool = True,
             block_budget_bytes: int = _DEFAULT_BLOCK_BUDGET_BYTES):
    """Pallas implementation of MseLoss.forward. Returns a scalar float32."""
    assert y_pred.shape == y_true.shape
    assert y_pred.ndim == 4
    if not from_logits:
        raise NotImplementedError("Only supports from_logits=True")

    N, C, H, W = y_pred.shape
    HW = H * W
    R = N * C
    # Dense 2-D view: rows are (sample, channel) pairs, lanes are pixels.
    # Unlike a (N, C, HW) view this has no per-sample sublane padding in the
    # HBM tiling when C is not a multiple of 8, so the kernel streams only
    # real bytes (the dominant cost of this memory-bound loss).
    yp = y_pred.reshape(R, HW)
    yt = y_true.reshape(R, HW)

    bn, t_hw = _choose_tiles(N, C, HW, block_budget_bytes)
    rn = bn * C
    n_tiles = N // bn
    s_tiles = HW // t_hw
    assert n_tiles * rn == R and s_tiles * t_hw == HW

    # Explicit scoped-VMEM request: 2 inputs x 2 pipeline buffers + headroom
    # for f32 temporaries (incl. the channel-padded relayout) and the tiny
    # output blocks.
    itemsize = jnp.dtype(y_pred.dtype).itemsize
    in_block_bytes = rn * t_hw * itemsize
    f32_block_bytes = rn * t_hw * 4
    vmem_limit = 4 * in_block_bytes + 16 * f32_block_bytes + (2 << 20)
    vmem_limit = int(min(max(vmem_limit, 32 << 20), 64 << 20))

    kernel = functools.partial(_mse_loss_kernel, bn=bn, C=C,
                               multiclass=(mode == MULTICLASS_MODE))

    partial_sums = pl.pallas_call(
        kernel,
        out_shape=jax.ShapeDtypeStruct((n_tiles, s_tiles, 1, C), jnp.float32),
        grid_spec=pltpu.PrefetchScalarGridSpec(
            num_scalar_prefetch=0,
            # Lane axis innermost -> consecutive grid steps read contiguous HBM.
            grid=(n_tiles, s_tiles),
            in_specs=[
                pl.BlockSpec((rn, t_hw), lambda n, s: (n, s)),
                pl.BlockSpec((rn, t_hw), lambda n, s: (n, s)),
            ],
            out_specs=pl.BlockSpec((1, 1, 1, C), lambda n, s: (n, s, 0, 0)),
        ),
        compiler_params=pltpu.CompilerParams(
            dimension_semantics=("parallel", "parallel"),
            vmem_limit_bytes=vmem_limit,
        ),
    )(yp, yt)

    # loss per channel = mean over (N, H, W).
    per_channel_sum = jnp.sum(partial_sums, axis=(0, 1, 2))      # (C,)
    loss_per_channel = per_channel_sum / jnp.float32(N * HW)
    # TODO(synk): aggregate_loss is not defined in the reference snippet;
    # assumed to be the mean over channels.
    return jnp.mean(loss_per_channel)


def _reference(y_pred, y_true, mode=MULTICLASS_MODE):
    if mode == MULTICLASS_MODE:
        p = jax.nn.softmax(y_pred.astype(jnp.float32), axis=1)
    else:
        p = jax.nn.sigmoid(y_pred.astype(jnp.float32))
    loss = jnp.mean((p - y_true.astype(jnp.float32)) ** 2, axis=(0, 2, 3))
    return jnp.mean(loss)


if __name__ == "__main__":
    key = jax.random.PRNGKey(0)

    # --- Test 1: small module-consistent shape (single lane-dense tile,
    #             whole batch packed into one grid step). ---
    k1, k2 = jax.random.split(key)
    N, C, H, W = 2, 4, 16, 16
    y_pred = jax.random.normal(k1, (N, C, H, W), dtype=jnp.float32)
    y_true = jax.nn.softmax(
        jax.random.normal(k2, (N, C, H, W), dtype=jnp.float32), axis=1)

    out_mc = mse_loss(y_pred, y_true, mode=MULTICLASS_MODE)
    out_bin = mse_loss(y_pred, y_true, mode=BINARY_MODE)
    jax.block_until_ready((out_mc, out_bin))

    ref_mc = _reference(y_pred, y_true, MULTICLASS_MODE)
    ref_bin = _reference(y_pred, y_true, BINARY_MODE)
    assert jnp.allclose(out_mc, ref_mc, atol=1e-5, rtol=1e-5), (out_mc, ref_mc)
    assert jnp.allclose(out_bin, ref_bin, atol=1e-5, rtol=1e-5), (out_bin, ref_bin)

    # --- Test 2: force a multi-tile grid (2 row tiles x 2 lane tiles) to
    #             exercise the 'parallel' per-tile partial-sum path. ---
    k3, k4 = jax.random.split(k1)
    N2, C2, H2, W2 = 4, 4, 16, 32                      # HW = 512
    y_pred2 = jax.random.normal(k3, (N2, C2, H2, W2), dtype=jnp.float32)
    y_true2 = jax.nn.softmax(
        jax.random.normal(k4, (N2, C2, H2, W2), dtype=jnp.float32), axis=1)

    out2_mc = mse_loss(y_pred2, y_true2, mode=MULTICLASS_MODE,
                       block_budget_bytes=4096)
    out2_ml = mse_loss(y_pred2, y_true2, mode=MULTILABEL_MODE,
                       block_budget_bytes=4096)
    jax.block_until_ready((out2_mc, out2_ml))

    ref2_mc = _reference(y_pred2, y_true2, MULTICLASS_MODE)
    ref2_ml = _reference(y_pred2, y_true2, BINARY_MODE)   # sigmoid path
    assert jnp.allclose(out2_mc, ref2_mc, atol=1e-5, rtol=1e-5), (out2_mc, ref2_mc)
    assert jnp.allclose(out2_ml, ref2_ml, atol=1e-5, rtol=1e-5), (out2_ml, ref2_ml)

    print("KERNEL_OK")
</pallas_src>

<mosaic_0001>
module attributes {stable_mosaic.version = 11 : i64} {
  func.func @_mse_loss_kernel(%arg0: i32, %arg1: i32, %arg2: memref<8x256xf32, #tpu.memory_space<vmem>>, %arg3: memref<8x256xf32, #tpu.memory_space<vmem>>, %arg4: memref<1x1x1x4xf32, #tpu.memory_space<vmem>>) attributes {dimension_semantics = [#tpu.dimension_semantics<parallel>, #tpu.dimension_semantics<parallel>], iteration_bounds = array<i64: 1, 1>, scalar_prefetch = 0 : i64, scratch_operands = 0 : i64, tpu.core_type = #tpu.core_type<tc>, window_params = [{transform_indices = @transform_0, window_bounds = array<i64: 8, 256>}, {transform_indices = @transform_1, window_bounds = array<i64: 8, 256>}, {transform_indices = @transform_2, window_bounds = array<i64: 1, 1, 1, 4>}]} {
    %c0 = arith.constant 0 : index
    %c0_0 = arith.constant 0 : index
    %0 = vector.load %arg2[%c0, %c0_0] : memref<8x256xf32, #tpu.memory_space<vmem>>, vector<8x256xf32>
    %c0_1 = arith.constant 0 : index
    %c0_2 = arith.constant 0 : index
    %1 = vector.load %arg3[%c0_1, %c0_2] : memref<8x256xf32, #tpu.memory_space<vmem>>, vector<8x256xf32>
    %2 = vector.shape_cast %0 : vector<8x256xf32> to vector<2x4x256xf32>
    %cst = arith.constant dense<0xFF800000> : vector<2x256xf32>
    %3 = vector.multi_reduction <maximumf>, %2, %cst [1] : vector<2x4x256xf32> to vector<2x256xf32>
    %4 = vector.shape_cast %3 : vector<2x256xf32> to vector<2x1x256xf32>
    %5 = vector.broadcast %4 : vector<2x1x256xf32> to vector<2x4x256xf32>
    %6 = arith.subf %2, %5 : vector<2x4x256xf32>
    %7 = math.exp %6 : vector<2x4x256xf32>
    %cst_3 = arith.constant dense<0.000000e+00> : vector<2x256xf32>
    %8 = vector.multi_reduction <add>, %7, %cst_3 [1] : vector<2x4x256xf32> to vector<2x256xf32>
    %9 = vector.shape_cast %8 : vector<2x256xf32> to vector<2x1x256xf32>
    %10 = tpu.reciprocal %9 : vector<2x1x256xf32> -> vector<2x1x256xf32>
    %11 = vector.broadcast %10 : vector<2x1x256xf32> to vector<2x4x256xf32>
    %12 = arith.mulf %7, %11 : vector<2x4x256xf32>
    %13 = vector.shape_cast %1 : vector<8x256xf32> to vector<2x4x256xf32>
    %14 = arith.subf %12, %13 : vector<2x4x256xf32>
    %15 = arith.mulf %14, %14 : vector<2x4x256xf32>
    %cst_4 = arith.constant dense<0.000000e+00> : vector<4xf32>
    %16 = vector.multi_reduction <add>, %15, %cst_4 [0, 2] : vector<2x4x256xf32> to vector<4xf32>
    %17 = vector.shape_cast %16 : vector<4xf32> to vector<1x1x1x4xf32>
    %c0_5 = arith.constant 0 : index
    %c0_6 = arith.constant 0 : index
    %c0_7 = arith.constant 0 : index
    %c0_8 = arith.constant 0 : index
    %18 = vector.load %arg4[%c0_5, %c0_6, %c0_7, %c0_8] : memref<1x1x1x4xf32, #tpu.memory_space<vmem>>, vector<1x1x1x4xf32>
    tpu.vector_store %arg4[%c0_5, %c0_6, %c0_7, %c0_8], %17 {strides = array<i32>} : memref<1x1x1x4xf32, #tpu.memory_space<vmem>>, vector<1x1x1x4xf32>,
    return
  }
  func.func @transform_0(%arg0: i32, %arg1: i32) -> (i32, i32) {
    %c0_i32 = arith.constant 0 : i32
    return %arg0, %arg1 : i32, i32
  }
  func.func @transform_1(%arg0: i32, %arg1: i32) -> (i32, i32) {
    %c0_i32 = arith.constant 0 : i32
    return %arg0, %arg1 : i32, i32
  }
  func.func @transform_2(%arg0: i32, %arg1: i32) -> (i32, i32, i32, i32) {
    %c0_i32 = arith.constant 0 : i32
    %c0_i32_0 = arith.constant 0 : i32
    %c0_i32_1 = arith.constant 0 : i32
    return %arg0, %arg1, %c0_i32, %c0_i32_0 : i32, i32, i32, i32
  }
}

</mosaic_0001>

<llo_original>
// kernel: tpu_custom_call.1
$region0: #{tpu_custom_call.1}
  #allocation0 [shape = 'u32[]', space=smem, size = 0x4, offset = 0x4, fixed_abs, tag = 'smem constant byte address 0x4 - core index']
  #allocation1 [shape = 'u32[144,128]{1,0:T(1,128)}', space=vmem, size = 0x12000, scoped, tag = 'internal scratch']
  %s0 = inlined_call_operand.hbm [shape: f32[8,256], index: 0, kind: input, shape index: {}]
  %s1 = inlined_call_operand.hbm [shape: f32[8,256], index: 1, kind: input, shape index: {}]
  %s2 = inlined_call_operand.hbm [shape: f32[1,1,1,4], index: 2, kind: output, shape index: {}]
  %s3 = sld [smem:[#allocation0]]
  $region26: #{tpu_custom_call.1} parent=0
    _
  %s5 = ssub.s32 1, %s3
  %s6 = scalar_select 0, %s5, %s3
  $region1: #{tpu_custom_call.1} parent=0
    #allocation2 [shape = 'u8[8192]{0}', space=vmem, size = 0x2000, scoped, tag = 'input window, operand 0, single buffered']
    #allocation3 [shape = 's32[1]{0}', space=sflag, size = 0x4, scoped, tag = 'scoped memory for tpu_custom_call.1']
    #allocation4 [shape = 's32[1]{0}', space=sflag, size = 0x4, scoped, tag = 'scoped memory for tpu_custom_call.1']
    #allocation5 [shape = 'u8[8192]{0}', space=vmem, size = 0x2000, scoped, tag = 'input window, operand 1, single buffered']
    #allocation6 [shape = 's32[1]{0}', space=sflag, size = 0x4, scoped, tag = 'scoped memory for tpu_custom_call.1']
    #allocation7 [shape = 'u8[512]{0}', space=vmem, size = 0x400, scoped, tag = 'output window, operand 0, single buffered']
    %7 = vsyncpa [#allocation3], 0
    %8 = vsyncpa [#allocation6], 0
    %9 = vsyncpa [#allocation4], 0
    // Predicated region
    $region2: #{tpu_custom_call.1} parent=1 // pred_check
      _
    $region3: #{tpu_custom_call.1} parent=1 // pred_check_branch
      %11 = sbr.rel (0) target = $region5
    $region4: #{tpu_custom_call.1} parent=1 // pred_region
      %s13 = ssub.s32 256, 256
      %14 = vsyncadd [#allocation3], %s13
      %s16 = sshll.u32 [#allocation2], 4
      %s17 = int_to_ptr.vmem [resolvable:$true] %s16
      %19 = dma.hbm_to_vmem [thread:$0]  %s0, 256, %s17, [#allocation3]
    $region5: #{tpu_custom_call.1} parent=1 // pred_fallthru
      _
    // Predicated region
    $region6: #{tpu_custom_call.1} parent=1 // pred_check
      _
    $region7: #{tpu_custom_call.1} parent=1 // pred_check_branch
      %21 = sbr.rel (0) target = $region9
    $region8: #{tpu_custom_call.1} parent=1 // pred_region
      %s23 = ssub.s32 256, 256
      %24 = vsyncadd [#allocation6], %s23
      %s26 = sshll.u32 [#allocation5], 4
      %s27 = int_to_ptr.vmem [resolvable:$true] %s26
      %29 = dma.hbm_to_vmem [thread:$0]  %s1, 256, %s27, [#allocation6]
    $region9: #{tpu_custom_call.1} parent=1 // pred_fallthru
      _
    // Predicated region
    $region10: #{tpu_custom_call.1} parent=1 // pred_check
      _
    $region11: #{tpu_custom_call.1} parent=1 // pred_check_branch
      %31 = sbr.rel (0) target = $region13
    $region12: #{tpu_custom_call.1} parent=1 // pred_region
      %32 = dma.done [#allocation3], 256
    $region13: #{tpu_custom_call.1} parent=1 // pred_fallthru
      _
    // Predicated region
    $region14: #{tpu_custom_call.1} parent=1 // pred_check
      _
    $region15: #{tpu_custom_call.1} parent=1 // pred_check_branch
      %34 = sbr.rel (0) target = $region17
    $region16: #{tpu_custom_call.1} parent=1 // pred_region
      %35 = dma.done [#allocation6], 256
    $region17: #{tpu_custom_call.1} parent=1 // pred_fallthru
      _
    %v36 = vld [vmem:[#allocation2] sm:$0xff]
    %v37 = vld [vmem:[#allocation2 + $0x8] sm:$0xff]
    %v38 = vld [vmem:[#allocation5] sm:$0xff]
    %v39 = vld [vmem:[#allocation5 + $0x8] sm:$0xff]
    %v42 = vcombine.low %v36, %v37
    %v43 = vcombine.high %v36, %v37
    %v46 = vcombine.high %v42, %v42
    %v47 = vcombine.high %v43, %v43
    %vm50 = vcmask 1043456
    %v51 = vsel %vm50, %v42, -inf
    %v52 = vrot.slane %v51, 4
    %v53 = vmax.f32 %v51, %v52
    %v54 = vrot.slane %v53, 2
    %v55 = vmax.f32 %v53, %v54
    %v56 = vrot.slane %v55, 1
    %v57 = vmax.f32 %v55, %v56
    %v58 = vsel %vm50, %v46, -inf
    %v59 = vrot.slane %v58, 4
    %v60 = vmax.f32 %v58, %v59
    %v61 = vrot.slane %v60, 2
    %v62 = vmax.f32 %v60, %v61
    %v63 = vrot.slane %v62, 1
    %v64 = vmax.f32 %v62, %v63
    %v65 = vsel %vm50, %v43, -inf
    %v66 = vrot.slane %v65, 4
    %v67 = vmax.f32 %v65, %v66
    %v68 = vrot.slane %v67, 2
    %v69 = vmax.f32 %v67, %v68
    %v70 = vrot.slane %v69, 1
    %v71 = vmax.f32 %v69, %v70
    %v72 = vsel %vm50, %v47, -inf
    %v73 = vrot.slane %v72, 4
    %v74 = vmax.f32 %v72, %v73
    %v75 = vrot.slane %v74, 2
    %v76 = vmax.f32 %v74, %v75
    %v77 = vrot.slane %v76, 1
    %v78 = vmax.f32 %v76, %v77
    %v83 = vcombine.low %v57, %v64
    %v84 = vcombine.low %v71, %v78
    %v87 = vsub.f32 %v42, %v83
    %v88 = vsub.f32 %v43, %v84
    %v89 = vmul.f32 %v87, 1.442695
    %v90 = vpow.pop %v89
    %v91 = vmul.f32 %v88, 1.442695
    %v92 = vpow.pop %v91
    %v95 = vcombine.high %v90, %v90
    %v96 = vcombine.high %v92, %v92
    %v99 = vsel %vm50, %v90, 0.0
    %v100 = vrot.slane %v99, 4
    %v101 = vadd.f32 %v99, %v100
    %v102 = vrot.slane %v101, 2
    %v103 = vadd.f32 %v101, %v102
    %v104 = vrot.slane %v103, 1
    %v105 = vadd.f32 %v103, %v104
    %v106 = vsel %vm50, %v95, 0.0
    %v107 = vrot.slane %v106, 4
    %v108 = vadd.f32 %v106, %v107
    %v109 = vrot.slane %v108, 2
    %v110 = vadd.f32 %v108, %v109
    %v111 = vrot.slane %v110, 1
    %v112 = vadd.f32 %v110, %v111
    %v113 = vsel %vm50, %v92, 0.0
    %v114 = vrot.slane %v113, 4
    %v115 = vadd.f32 %v113, %v114
    %v116 = vrot.slane %v115, 2
    %v117 = vadd.f32 %v115, %v116
    %v118 = vrot.slane %v117, 1
    %v119 = vadd.f32 %v117, %v118
    %v120 = vsel %vm50, %v96, 0.0
    %v121 = vrot.slane %v120, 4
    %v122 = vadd.f32 %v120, %v121
    %v123 = vrot.slane %v122, 2
    %v124 = vadd.f32 %v122, %v123
    %v125 = vrot.slane %v124, 1
    %v126 = vadd.f32 %v124, %v125
    %v127 = vrcp.pop %v105
    %v128 = vrcp.pop %v112
    %v129 = vrcp.pop %v119
    %v130 = vrcp.pop %v126
    %v135 = vcombine.low %v127, %v128
    %v136 = vcombine.low %v129, %v130
    %v139 = vmul.f32 %v90, %v135
    %v140 = vmul.f32 %v92, %v136
    %v143 = vcombine.low %v38, %v39
    %v144 = vcombine.high %v38, %v39
    %v147 = vsub.f32 %v139, %v143
    %v148 = vsub.f32 %v140, %v144
    %v149 = vmul.f32 %v147, %v147
    %v150 = vmul.f32 %v148, %v148
    %v153 = vcombine.high %v149, %v149
    %v154 = vcombine.high %v150, %v150
    %v157 = vsel %vm50, %v149, 0.0
    %v158 = vsel %vm50, %v153, 0.0
    %v159 = vadd.f32 %v157, %v158
    %v160 = vsel %vm50, %v150, 0.0
    %v161 = vadd.f32 %v159, %v160
    %v162 = vsel %vm50, %v154, 0.0
    %v163 = vadd.f32 %v161, %v162
    %164 = vadd.xlane.f32.xlu0 %v163
    %v165 = vpop.xlane.xlu0 %164
    %v167 = vlaneseq
    %v168 = vand.u32 %v167, 127
    %v169 = vlaneseq
    %v170 = vshrl.u32 %v169, 7
    %v171 = vsub.s32 %v168, %v170
    %v172 = vrot.slane %v165, %v171
    %vm174 = vcmask 24576
    %175 = vst.msk [vmem:[#allocation7] sm:$0x1] %vm174, %v172
    // Predicated region
    $region18: #{tpu_custom_call.1} parent=1 // pred_check
      _
    $region19: #{tpu_custom_call.1} parent=1 // pred_check_branch
      %177 = sbr.rel (0) target = $region21
    $region20: #{tpu_custom_call.1} parent=1 // pred_region
      %s179 = ssub.s32 16, 16
      %180 = vsyncadd [#allocation4], %s179
      %s182 = sshll.u32 [#allocation7], 4
      %s183 = int_to_ptr.vmem [resolvable:$true] %s182
      %185 = dma.vmem_to_hbm [thread:$0]  %s183, 16, %s2, [#allocation4]
    $region21: #{tpu_custom_call.1} parent=1 // pred_fallthru
      _
    // Predicated region
    $region22: #{tpu_custom_call.1} parent=1 // pred_check
      _
    $region23: #{tpu_custom_call.1} parent=1 // pred_check_branch
      %187 = sbr.rel (0) target = $region25
    $region24: #{tpu_custom_call.1} parent=1 // pred_region
      %188 = dma.done [#allocation4], 16
    $region25: #{tpu_custom_call.1} parent=1 // pred_fallthru
      _
    %189 = vsyncpa [#allocation3], 1
    %190 = vsyncpa [#allocation6], 1
    %191 = vsyncpa [#allocation4], 1

</llo_original>
